<compile_context>
chip_gen: v5e
topology: v5e:2x2
jax: 0.10.0
libtpu: 0.0.40
codegen_flags: <defaults>
</compile_context>

<pallas_src>
import jax
import jax.numpy as jnp
from jax.experimental import pallas as pl
from jax.experimental.pallas import tpu as pltpu


def _make_fused_kernel(no_layers, H, W, cins):
    """Build the fused (conv3x3 + folded-BN + ReLU) x no_layers kernel body."""
    HW = H * W
    BASE = W + 1  # start of the real activation inside the flat-padded row

    def kernel(*refs):
        # refs = (x, w_0, b_0, ..., w_{L-1}, b_{L-1}, out, pad_scratch, patch_scratch)
        x_ref = refs[0]
        o_ref = refs[1 + 2 * no_layers]
        pad_ref = refs[2 + 2 * no_layers]    # (Cmax, H*W + 2*W + 2) flat zero-padded act
        patch_ref = refs[3 + 2 * no_layers]  # (9*Cmax, H*W) im2col staging

        # Zero the flat-padded scratch once per image; the interior is overwritten
        # every layer, the halo columns stay zero across layers.
        pad_ref[...] = jnp.zeros(pad_ref.shape, pad_ref.dtype)

        # Column-validity masks (only taps with a horizontal offset need masking;
        # the vertical halo reads land in the zeroed pad region).
        col = jax.lax.broadcasted_iota(jnp.int32, (1, HW), 1) % W
        col_masks = {-1: col >= 1, 0: None, 1: col <= W - 2}
        taps = [(BASE + dh * W + dw, col_masks[dw])
                for dh in (-1, 0, 1) for dw in (-1, 0, 1)]

        act = x_ref[0].astype(jnp.float32)   # (Cin0, H*W), lane-dense
        for l in range(no_layers):
            w_ref = refs[1 + 2 * l]          # (Cout, 9*Cin), BN scale folded in
            b_ref = refs[2 + 2 * l]          # (Cout, 1) folded conv bias + BN shift
            cin = cins[l]

            # Stash the activation into the flat zero-padded scratch.
            pad_ref[0:cin, BASE:BASE + HW] = act

            # im2col: 9 static lane-offset views -> (9*Cin, H*W) patch matrix.
            for t, (off, mask) in enumerate(taps):
                piece = pad_ref[0:cin, off:off + HW]
                if mask is not None:
                    piece = jnp.where(mask, piece, 0.0)
                patch_ref[t * cin:(t + 1) * cin, :] = piece

            # Single MXU matmul per layer: (Cout, 9*Cin) x (9*Cin, H*W).
            acc = jnp.dot(w_ref[...], patch_ref[0:9 * cin, :],
                          preferred_element_type=jnp.float32)
            act = jnp.maximum(acc + b_ref[...], 0.0)   # folded bias + ReLU

        o_ref[0] = act.astype(o_ref.dtype)

    return kernel


def stacked_filter_layer(x_nchw, params, eps=1e-5):
    """StackedFilterLayer forward.

    NOTE: BatchNorm2d is evaluated in inference mode (running statistics); its
    affine transform and the Conv2d bias are folded into per-layer weights/bias.
    """
    N, C, H, W = x_nchw.shape
    HW = H * W
    no_layers = len(params)

    # Fold BN (running stats) + conv bias into (Cout, 9*Cin) weights and (Cout, 1) bias.
    mats, biases, cins = [], [], []
    for (w, b, gamma, beta, rmean, rvar) in params:
        cout, cin = w.shape[0], w.shape[1]
        s = gamma / jnp.sqrt(rvar + eps)                               # (Cout,)
        # OIHW -> (O, kh, kw, I) -> (O, 9*I); column (kh*3+kw)*Cin + c matches the
        # kernel's tap order (dh outer, dw inner).
        wmat = jnp.transpose(w, (0, 2, 3, 1)).reshape(cout, 9 * cin)
        mats.append(wmat * s[:, None])                                 # fold BN scale
        biases.append(((b - rmean) * s + beta).reshape(cout, 1))       # fold bias + shift
        cins.append(cin)
    cout_last = mats[-1].shape[0]
    cmax = max(cins)

    # Native NCHW: each image is a (C, H*W) matrix (contiguous reshape, no transpose).
    x_flat = x_nchw.reshape(N, C, HW)

    in_specs = [pl.BlockSpec((1, C, HW), lambda n: (n, 0, 0))]
    operands = [x_flat]
    for wmat, bias in zip(mats, biases):
        in_specs.append(pl.BlockSpec(wmat.shape, lambda n: (0, 0)))
        in_specs.append(pl.BlockSpec(bias.shape, lambda n: (0, 0)))
        operands.append(wmat)
        operands.append(bias)

    out = pl.pallas_call(
        _make_fused_kernel(no_layers, H, W, cins),
        out_shape=jax.ShapeDtypeStruct((N, cout_last, HW), jnp.float32),
        grid=(N,),
        in_specs=in_specs,
        out_specs=pl.BlockSpec((1, cout_last, HW), lambda n: (n, 0, 0)),
        scratch_shapes=[
            pltpu.VMEM((cmax, HW + 2 * W + 2), jnp.float32),   # flat-padded activation
            pltpu.VMEM((9 * cmax, HW), jnp.float32),           # im2col patch matrix
        ],
        compiler_params=pltpu.CompilerParams(
            dimension_semantics=("parallel",)),
    )(*operands)
    return out.reshape(N, cout_last, H, W)


def init_params(key, in_dim, no_layers, no_filters):
    """Deterministic synthetic parameters matching the module's __init__ shapes."""
    params = []
    cin = in_dim
    for _ in range(no_layers):
        key, kw, kb, kg, kbt, km, kv = jax.random.split(key, 7)
        w = 0.1 * jax.random.normal(kw, (no_filters, cin, 3, 3), jnp.float32)   # OIHW
        b = 0.1 * jax.random.normal(kb, (no_filters,), jnp.float32)             # conv bias
        gamma = 1.0 + 0.1 * jax.random.normal(kg, (no_filters,), jnp.float32)   # BN weight
        beta = 0.1 * jax.random.normal(kbt, (no_filters,), jnp.float32)         # BN bias
        rmean = 0.1 * jax.random.normal(km, (no_filters,), jnp.float32)         # running_mean
        rvar = jnp.abs(jax.random.normal(kv, (no_filters,), jnp.float32)) + 0.5 # running_var
        params.append((w, b, gamma, beta, rmean, rvar))
        cin = no_filters
    return params


if __name__ == "__main__":
    key = jax.random.PRNGKey(0)
    k_x, k_p = jax.random.split(key)

    N, in_dim, H, W = 2, 4, 16, 16
    no_layers, no_filters = 2, 8

    x = jax.random.normal(k_x, (N, in_dim, H, W), jnp.float32)   # NCHW, like PyTorch
    params = init_params(k_p, in_dim, no_layers, no_filters)

    out = stacked_filter_layer(x, params)
    jax.block_until_ready(out)
    assert out.shape == (N, no_filters, H, W)
    print("KERNEL_OK")
</pallas_src>

<mosaic_0001>
module attributes {stable_mosaic.version = 11 : i64} {
  func.func @kernel(%arg0: i32, %arg1: memref<1x4x256xf32, #tpu.memory_space<vmem>>, %arg2: memref<8x36xf32, #tpu.memory_space<vmem>>, %arg3: memref<8x1xf32, #tpu.memory_space<vmem>>, %arg4: memref<8x72xf32, #tpu.memory_space<vmem>>, %arg5: memref<8x1xf32, #tpu.memory_space<vmem>>, %arg6: memref<1x8x256xf32, #tpu.memory_space<vmem>>, %arg7: memref<8x290xf32, #tpu.memory_space<vmem>>, %arg8: memref<72x256xf32, #tpu.memory_space<vmem>>) attributes {dimension_semantics = [#tpu.dimension_semantics<parallel>], iteration_bounds = array<i64: 2>, scalar_prefetch = 0 : i64, scratch_operands = 2 : i64, tpu.core_type = #tpu.core_type<tc>, window_params = [{transform_indices = @transform_0, window_bounds = array<i64: 1, 4, 256>}, {pipeline_mode = #tpu.pipeline_mode<synchronous>, transform_indices = @transform_1, window_bounds = array<i64: 8, 36>}, {pipeline_mode = #tpu.pipeline_mode<synchronous>, transform_indices = @transform_2, window_bounds = array<i64: 8, 1>}, {pipeline_mode = #tpu.pipeline_mode<synchronous>, transform_indices = @transform_3, window_bounds = array<i64: 8, 72>}, {pipeline_mode = #tpu.pipeline_mode<synchronous>, transform_indices = @transform_4, window_bounds = array<i64: 8, 1>}, {transform_indices = @transform_5, window_bounds = array<i64: 1, 8, 256>}]} {
    %cst = arith.constant 0.000000e+00 : f32
    %0 = vector.broadcast %cst : f32 to vector<8x290xf32>
    %c0 = arith.constant 0 : index
    %c0_0 = arith.constant 0 : index
    %1 = vector.load %arg7[%c0, %c0_0] : memref<8x290xf32, #tpu.memory_space<vmem>>, vector<8x290xf32>
    tpu.vector_store %arg7[%c0, %c0_0], %0 {strides = array<i32>} : memref<8x290xf32, #tpu.memory_space<vmem>>, vector<8x290xf32>,
    %2 = tpu.iota {dimensions = array<i32: 1>} : vector<1x256xi32>
    %c16_i32 = arith.constant 16 : i32
    %c0_i32 = arith.constant 0 : i32
    %3 = arith.cmpi eq, %c16_i32, %c0_i32 : i32
    %c1_i32 = arith.constant 1 : i32
    %4 = arith.select %3, %c1_i32, %c16_i32 : i32
    %5 = vector.broadcast %4 : i32 to vector<1x256xi32>
    %6 = arith.remsi %2, %5 : vector<1x256xi32>
    %c0_i32_1 = arith.constant 0 : i32
    %7 = vector.broadcast %c0_i32_1 : i32 to vector<1x256xi32>
    %8 = arith.cmpi ne, %6, %7 : vector<1x256xi32>
    %c0_i32_2 = arith.constant 0 : i32
    %9 = vector.broadcast %c0_i32_2 : i32 to vector<1x256xi32>
    %10 = arith.cmpi slt, %6, %9 : vector<1x256xi32>
    %c0_i32_3 = arith.constant 0 : i32
    %11 = arith.cmpi slt, %4, %c0_i32_3 : i32
    %12 = vector.broadcast %11 : i1 to vector<1x256xi1>
    %13 = vector.broadcast %12 : vector<1x256xi1> to vector<1x256xi1>
    %14 = arith.xori %10, %13 : vector<1x256xi1>
    %15 = arith.andi %14, %8 : vector<1x256xi1>
    %16 = vector.broadcast %4 : i32 to vector<1x256xi32>
    %17 = arith.addi %6, %16 : vector<1x256xi32>
    %18 = arith.select %15, %17, %6 : vector<1x256xi1>, vector<1x256xi32>
    %c1_i32_4 = arith.constant 1 : i32
    %19 = vector.broadcast %c1_i32_4 : i32 to vector<1x256xi32>
    %20 = arith.cmpi sge, %18, %19 : vector<1x256xi32>
    %c14_i32 = arith.constant 14 : i32
    %21 = vector.broadcast %c14_i32 : i32 to vector<1x256xi32>
    %22 = arith.cmpi sle, %18, %21 : vector<1x256xi32>
    %c0_5 = arith.constant 0 : index
    %c0_6 = arith.constant 0 : index
    %c0_7 = arith.constant 0 : index
    %23 = vector.load %arg1[%c0_5, %c0_6, %c0_7] : memref<1x4x256xf32, #tpu.memory_space<vmem>>, vector<1x4x256xf32>
    %24 = vector.shape_cast %23 : vector<1x4x256xf32> to vector<4x256xf32>
    %c0_8 = arith.constant 0 : index
    %c17 = arith.constant 17 : index
    %25 = vector.load %arg7[%c0_8, %c17] : memref<8x290xf32, #tpu.memory_space<vmem>>, vector<4x256xf32>
    tpu.vector_store %arg7[%c0_8, %c17], %24 {strides = array<i32>} : memref<8x290xf32, #tpu.memory_space<vmem>>, vector<4x256xf32>,
    %c0_9 = arith.constant 0 : index
    %c0_10 = arith.constant 0 : index
    %26 = vector.load %arg7[%c0_9, %c0_10] : memref<8x290xf32, #tpu.memory_space<vmem>>, vector<4x256xf32>
    %cst_11 = arith.constant 0.000000e+00 : f32
    %27 = vector.shape_cast %20 : vector<1x256xi1> to vector<1x256xi1>
    %28 = vector.broadcast %27 : vector<1x256xi1> to vector<4x256xi1>
    %29 = vector.broadcast %cst_11 : f32 to vector<4x256xf32>
    %30 = arith.select %28, %26, %29 : vector<4x256xi1>, vector<4x256xf32>
    %c0_12 = arith.constant 0 : index
    %c0_13 = arith.constant 0 : index
    %31 = vector.load %arg8[%c0_12, %c0_13] : memref<72x256xf32, #tpu.memory_space<vmem>>, vector<4x256xf32>
    tpu.vector_store %arg8[%c0_12, %c0_13], %30 {strides = array<i32>} : memref<72x256xf32, #tpu.memory_space<vmem>>, vector<4x256xf32>,
    %c0_14 = arith.constant 0 : index
    %c1 = arith.constant 1 : index
    %32 = vector.load %arg7[%c0_14, %c1] : memref<8x290xf32, #tpu.memory_space<vmem>>, vector<4x256xf32>
    %c4 = arith.constant 4 : index
    %c0_15 = arith.constant 0 : index
    %33 = vector.load %arg8[%c4, %c0_15] : memref<72x256xf32, #tpu.memory_space<vmem>>, vector<4x256xf32>
    tpu.vector_store %arg8[%c4, %c0_15], %32 {strides = array<i32>} : memref<72x256xf32, #tpu.memory_space<vmem>>, vector<4x256xf32>,
    %c0_16 = arith.constant 0 : index
    %c2 = arith.constant 2 : index
    %34 = vector.load %arg7[%c0_16, %c2] : memref<8x290xf32, #tpu.memory_space<vmem>>, vector<4x256xf32>
    %cst_17 = arith.constant 0.000000e+00 : f32
    %35 = vector.shape_cast %22 : vector<1x256xi1> to vector<1x256xi1>
    %36 = vector.broadcast %35 : vector<1x256xi1> to vector<4x256xi1>
    %37 = vector.broadcast %cst_17 : f32 to vector<4x256xf32>
    %38 = arith.select %36, %34, %37 : vector<4x256xi1>, vector<4x256xf32>
    %c8 = arith.constant 8 : index
    %c0_18 = arith.constant 0 : index
    %39 = vector.load %arg8[%c8, %c0_18] : memref<72x256xf32, #tpu.memory_space<vmem>>, vector<4x256xf32>
    tpu.vector_store %arg8[%c8, %c0_18], %38 {strides = array<i32>} : memref<72x256xf32, #tpu.memory_space<vmem>>, vector<4x256xf32>,
    %c0_19 = arith.constant 0 : index
    %c16 = arith.constant 16 : index
    %40 = vector.load %arg7[%c0_19, %c16] : memref<8x290xf32, #tpu.memory_space<vmem>>, vector<4x256xf32>
    %cst_20 = arith.constant 0.000000e+00 : f32
    %41 = vector.shape_cast %20 : vector<1x256xi1> to vector<1x256xi1>
    %42 = vector.broadcast %41 : vector<1x256xi1> to vector<4x256xi1>
    %43 = vector.broadcast %cst_20 : f32 to vector<4x256xf32>
    %44 = arith.select %42, %40, %43 : vector<4x256xi1>, vector<4x256xf32>
    %c12 = arith.constant 12 : index
    %c0_21 = arith.constant 0 : index
    %45 = vector.load %arg8[%c12, %c0_21] : memref<72x256xf32, #tpu.memory_space<vmem>>, vector<4x256xf32>
    tpu.vector_store %arg8[%c12, %c0_21], %44 {strides = array<i32>} : memref<72x256xf32, #tpu.memory_space<vmem>>, vector<4x256xf32>,
    %c0_22 = arith.constant 0 : index
    %c17_23 = arith.constant 17 : index
    %46 = vector.load %arg7[%c0_22, %c17_23] : memref<8x290xf32, #tpu.memory_space<vmem>>, vector<4x256xf32>
    %c16_24 = arith.constant 16 : index
    %c0_25 = arith.constant 0 : index
    %47 = vector.load %arg8[%c16_24, %c0_25] : memref<72x256xf32, #tpu.memory_space<vmem>>, vector<4x256xf32>
    tpu.vector_store %arg8[%c16_24, %c0_25], %46 {strides = array<i32>} : memref<72x256xf32, #tpu.memory_space<vmem>>, vector<4x256xf32>,
    %c0_26 = arith.constant 0 : index
    %c18 = arith.constant 18 : index
    %48 = vector.load %arg7[%c0_26, %c18] : memref<8x290xf32, #tpu.memory_space<vmem>>, vector<4x256xf32>
    %cst_27 = arith.constant 0.000000e+00 : f32
    %49 = vector.shape_cast %22 : vector<1x256xi1> to vector<1x256xi1>
    %50 = vector.broadcast %49 : vector<1x256xi1> to vector<4x256xi1>
    %51 = vector.broadcast %cst_27 : f32 to vector<4x256xf32>
    %52 = arith.select %50, %48, %51 : vector<4x256xi1>, vector<4x256xf32>
    %c20 = arith.constant 20 : index
    %c0_28 = arith.constant 0 : index
    %53 = vector.load %arg8[%c20, %c0_28] : memref<72x256xf32, #tpu.memory_space<vmem>>, vector<4x256xf32>
    tpu.vector_store %arg8[%c20, %c0_28], %52 {strides = array<i32>} : memref<72x256xf32, #tpu.memory_space<vmem>>, vector<4x256xf32>,
    %c0_29 = arith.constant 0 : index
    %c32 = arith.constant 32 : index
    %54 = vector.load %arg7[%c0_29, %c32] : memref<8x290xf32, #tpu.memory_space<vmem>>, vector<4x256xf32>
    %cst_30 = arith.constant 0.000000e+00 : f32
    %55 = vector.shape_cast %20 : vector<1x256xi1> to vector<1x256xi1>
    %56 = vector.broadcast %55 : vector<1x256xi1> to vector<4x256xi1>
    %57 = vector.broadcast %cst_30 : f32 to vector<4x256xf32>
    %58 = arith.select %56, %54, %57 : vector<4x256xi1>, vector<4x256xf32>
    %c24 = arith.constant 24 : index
    %c0_31 = arith.constant 0 : index
    %59 = vector.load %arg8[%c24, %c0_31] : memref<72x256xf32, #tpu.memory_space<vmem>>, vector<4x256xf32>
    tpu.vector_store %arg8[%c24, %c0_31], %58 {strides = array<i32>} : memref<72x256xf32, #tpu.memory_space<vmem>>, vector<4x256xf32>,
    %c0_32 = arith.constant 0 : index
    %c33 = arith.constant 33 : index
    %60 = vector.load %arg7[%c0_32, %c33] : memref<8x290xf32, #tpu.memory_space<vmem>>, vector<4x256xf32>
    %c28 = arith.constant 28 : index
    %c0_33 = arith.constant 0 : index
    %61 = vector.load %arg8[%c28, %c0_33] : memref<72x256xf32, #tpu.memory_space<vmem>>, vector<4x256xf32>
    tpu.vector_store %arg8[%c28, %c0_33], %60 {strides = array<i32>} : memref<72x256xf32, #tpu.memory_space<vmem>>, vector<4x256xf32>,
    %c0_34 = arith.constant 0 : index
    %c34 = arith.constant 34 : index
    %62 = vector.load %arg7[%c0_34, %c34] : memref<8x290xf32, #tpu.memory_space<vmem>>, vector<4x256xf32>
    %cst_35 = arith.constant 0.000000e+00 : f32
    %63 = vector.shape_cast %22 : vector<1x256xi1> to vector<1x256xi1>
    %64 = vector.broadcast %63 : vector<1x256xi1> to vector<4x256xi1>
    %65 = vector.broadcast %cst_35 : f32 to vector<4x256xf32>
    %66 = arith.select %64, %62, %65 : vector<4x256xi1>, vector<4x256xf32>
    %c32_36 = arith.constant 32 : index
    %c0_37 = arith.constant 0 : index
    %67 = vector.load %arg8[%c32_36, %c0_37] : memref<72x256xf32, #tpu.memory_space<vmem>>, vector<4x256xf32>
    tpu.vector_store %arg8[%c32_36, %c0_37], %66 {strides = array<i32>} : memref<72x256xf32, #tpu.memory_space<vmem>>, vector<4x256xf32>,
    %c0_38 = arith.constant 0 : index
    %c0_39 = arith.constant 0 : index
    %68 = vector.load %arg2[%c0_38, %c0_39] : memref<8x36xf32, #tpu.memory_space<vmem>>, vector<8x36xf32>
    %c0_40 = arith.constant 0 : index
    %c0_41 = arith.constant 0 : index
    %69 = vector.load %arg8[%c0_40, %c0_41] : memref<72x256xf32, #tpu.memory_space<vmem>>, vector<36x256xf32>
    %cst_42 = arith.constant dense<0.000000e+00> : vector<8x256xf32>
    %70 = tpu.matmul %68, %69, %cst_42 {dimension_numbers = #tpu.dot_dimension_numbers<[1], [0], [0], [1], [0, 0, 1, 1], [], []>} : vector<8x36xf32>, vector<36x256xf32>, vector<8x256xf32> -> vector<8x256xf32>
    %c0_43 = arith.constant 0 : index
    %c0_44 = arith.constant 0 : index
    %71 = vector.load %arg3[%c0_43, %c0_44] : memref<8x1xf32, #tpu.memory_space<vmem>>, vector<8x1xf32>
    %72 = vector.broadcast %71 : vector<8x1xf32> to vector<8x256xf32>
    %73 = arith.addf %70, %72 : vector<8x256xf32>
    %cst_45 = arith.constant 0.000000e+00 : f32
    %74 = vector.broadcast %cst_45 : f32 to vector<8x256xf32>
    %75 = arith.maximumf %73, %74 : vector<8x256xf32>
    %c0_46 = arith.constant 0 : index
    %c17_47 = arith.constant 17 : index
    %76 = vector.load %arg7[%c0_46, %c17_47] : memref<8x290xf32, #tpu.memory_space<vmem>>, vector<8x256xf32>
    tpu.vector_store %arg7[%c0_46, %c17_47], %75 {strides = array<i32>} : memref<8x290xf32, #tpu.memory_space<vmem>>, vector<8x256xf32>,
    %c0_48 = arith.constant 0 : index
    %c0_49 = arith.constant 0 : index
    %77 = vector.load %arg7[%c0_48, %c0_49] : memref<8x290xf32, #tpu.memory_space<vmem>>, vector<8x256xf32>
    %cst_50 = arith.constant 0.000000e+00 : f32
    %78 = vector.shape_cast %20 : vector<1x256xi1> to vector<1x256xi1>
    %79 = vector.broadcast %78 : vector<1x256xi1> to vector<8x256xi1>
    %80 = vector.broadcast %cst_50 : f32 to vector<8x256xf32>
    %81 = arith.select %79, %77, %80 : vector<8x256xi1>, vector<8x256xf32>
    %c0_51 = arith.constant 0 : index
    %c0_52 = arith.constant 0 : index
    %82 = vector.load %arg8[%c0_51, %c0_52] : memref<72x256xf32, #tpu.memory_space<vmem>>, vector<8x256xf32>
    tpu.vector_store %arg8[%c0_51, %c0_52], %81 {strides = array<i32>} : memref<72x256xf32, #tpu.memory_space<vmem>>, vector<8x256xf32>,
    %c0_53 = arith.constant 0 : index
    %c1_54 = arith.constant 1 : index
    %83 = vector.load %arg7[%c0_53, %c1_54] : memref<8x290xf32, #tpu.memory_space<vmem>>, vector<8x256xf32>
    %c8_55 = arith.constant 8 : index
    %c0_56 = arith.constant 0 : index
    %84 = vector.load %arg8[%c8_55, %c0_56] : memref<72x256xf32, #tpu.memory_space<vmem>>, vector<8x256xf32>
    tpu.vector_store %arg8[%c8_55, %c0_56], %83 {strides = array<i32>} : memref<72x256xf32, #tpu.memory_space<vmem>>, vector<8x256xf32>,
    %c0_57 = arith.constant 0 : index
    %c2_58 = arith.constant 2 : index
    %85 = vector.load %arg7[%c0_57, %c2_58] : memref<8x290xf32, #tpu.memory_space<vmem>>, vector<8x256xf32>
    %cst_59 = arith.constant 0.000000e+00 : f32
    %86 = vector.shape_cast %22 : vector<1x256xi1> to vector<1x256xi1>
    %87 = vector.broadcast %86 : vector<1x256xi1> to vector<8x256xi1>
    %88 = vector.broadcast %cst_59 : f32 to vector<8x256xf32>
    %89 = arith.select %87, %85, %88 : vector<8x256xi1>, vector<8x256xf32>
    %c16_60 = arith.constant 16 : index
    %c0_61 = arith.constant 0 : index
    %90 = vector.load %arg8[%c16_60, %c0_61] : memref<72x256xf32, #tpu.memory_space<vmem>>, vector<8x256xf32>
    tpu.vector_store %arg8[%c16_60, %c0_61], %89 {strides = array<i32>} : memref<72x256xf32, #tpu.memory_space<vmem>>, vector<8x256xf32>,
    %c0_62 = arith.constant 0 : index
    %c16_63 = arith.constant 16 : index
    %91 = vector.load %arg7[%c0_62, %c16_63] : memref<8x290xf32, #tpu.memory_space<vmem>>, vector<8x256xf32>
    %cst_64 = arith.constant 0.000000e+00 : f32
    %92 = vector.shape_cast %20 : vector<1x256xi1> to vector<1x256xi1>
    %93 = vector.broadcast %92 : vector<1x256xi1> to vector<8x256xi1>
    %94 = vector.broadcast %cst_64 : f32 to vector<8x256xf32>
    %95 = arith.select %93, %91, %94 : vector<8x256xi1>, vector<8x256xf32>
    %c24_65 = arith.constant 24 : index
    %c0_66 = arith.constant 0 : index
    %96 = vector.load %arg8[%c24_65, %c0_66] : memref<72x256xf32, #tpu.memory_space<vmem>>, vector<8x256xf32>
    tpu.vector_store %arg8[%c24_65, %c0_66], %95 {strides = array<i32>} : memref<72x256xf32, #tpu.memory_space<vmem>>, vector<8x256xf32>,
    %c0_67 = arith.constant 0 : index
    %c17_68 = arith.constant 17 : index
    %97 = vector.load %arg7[%c0_67, %c17_68] : memref<8x290xf32, #tpu.memory_space<vmem>>, vector<8x256xf32>
    %c32_69 = arith.constant 32 : index
    %c0_70 = arith.constant 0 : index
    %98 = vector.load %arg8[%c32_69, %c0_70] : memref<72x256xf32, #tpu.memory_space<vmem>>, vector<8x256xf32>
    tpu.vector_store %arg8[%c32_69, %c0_70], %97 {strides = array<i32>} : memref<72x256xf32, #tpu.memory_space<vmem>>, vector<8x256xf32>,
    %c0_71 = arith.constant 0 : index
    %c18_72 = arith.constant 18 : index
    %99 = vector.load %arg7[%c0_71, %c18_72] : memref<8x290xf32, #tpu.memory_space<vmem>>, vector<8x256xf32>
    %cst_73 = arith.constant 0.000000e+00 : f32
    %100 = vector.shape_cast %22 : vector<1x256xi1> to vector<1x256xi1>
    %101 = vector.broadcast %100 : vector<1x256xi1> to vector<8x256xi1>
    %102 = vector.broadcast %cst_73 : f32 to vector<8x256xf32>
    %103 = arith.select %101, %99, %102 : vector<8x256xi1>, vector<8x256xf32>
    %c40 = arith.constant 40 : index
    %c0_74 = arith.constant 0 : index
    %104 = vector.load %arg8[%c40, %c0_74] : memref<72x256xf32, #tpu.memory_space<vmem>>, vector<8x256xf32>
    tpu.vector_store %arg8[%c40, %c0_74], %103 {strides = array<i32>} : memref<72x256xf32, #tpu.memory_space<vmem>>, vector<8x256xf32>,
    %c0_75 = arith.constant 0 : index
    %c32_76 = arith.constant 32 : index
    %105 = vector.load %arg7[%c0_75, %c32_76] : memref<8x290xf32, #tpu.memory_space<vmem>>, vector<8x256xf32>
    %cst_77 = arith.constant 0.000000e+00 : f32
    %106 = vector.shape_cast %20 : vector<1x256xi1> to vector<1x256xi1>
    %107 = vector.broadcast %106 : vector<1x256xi1> to vector<8x256xi1>
    %108 = vector.broadcast %cst_77 : f32 to vector<8x256xf32>
    %109 = arith.select %107, %105, %108 : vector<8x256xi1>, vector<8x256xf32>
    %c48 = arith.constant 48 : index
    %c0_78 = arith.constant 0 : index
    %110 = vector.load %arg8[%c48, %c0_78] : memref<72x256xf32, #tpu.memory_space<vmem>>, vector<8x256xf32>
    tpu.vector_store %arg8[%c48, %c0_78], %109 {strides = array<i32>} : memref<72x256xf32, #tpu.memory_space<vmem>>, vector<8x256xf32>,
    %c0_79 = arith.constant 0 : index
    %c33_80 = arith.constant 33 : index
    %111 = vector.load %arg7[%c0_79, %c33_80] : memref<8x290xf32, #tpu.memory_space<vmem>>, vector<8x256xf32>
    %c56 = arith.constant 56 : index
    %c0_81 = arith.constant 0 : index
    %112 = vector.load %arg8[%c56, %c0_81] : memref<72x256xf32, #tpu.memory_space<vmem>>, vector<8x256xf32>
    tpu.vector_store %arg8[%c56, %c0_81], %111 {strides = array<i32>} : memref<72x256xf32, #tpu.memory_space<vmem>>, vector<8x256xf32>,
    %c0_82 = arith.constant 0 : index
    %c34_83 = arith.constant 34 : index
    %113 = vector.load %arg7[%c0_82, %c34_83] : memref<8x290xf32, #tpu.memory_space<vmem>>, vector<8x256xf32>
    %cst_84 = arith.constant 0.000000e+00 : f32
    %114 = vector.shape_cast %22 : vector<1x256xi1> to vector<1x256xi1>
    %115 = vector.broadcast %114 : vector<1x256xi1> to vector<8x256xi1>
    %116 = vector.broadcast %cst_84 : f32 to vector<8x256xf32>
    %117 = arith.select %115, %113, %116 : vector<8x256xi1>, vector<8x256xf32>
    %c64 = arith.constant 64 : index
    %c0_85 = arith.constant 0 : index
    %118 = vector.load %arg8[%c64, %c0_85] : memref<72x256xf32, #tpu.memory_space<vmem>>, vector<8x256xf32>
    tpu.vector_store %arg8[%c64, %c0_85], %117 {strides = array<i32>} : memref<72x256xf32, #tpu.memory_space<vmem>>, vector<8x256xf32>,
    %c0_86 = arith.constant 0 : index
    %c0_87 = arith.constant 0 : index
    %119 = vector.load %arg4[%c0_86, %c0_87] : memref<8x72xf32, #tpu.memory_space<vmem>>, vector<8x72xf32>
    %c0_88 = arith.constant 0 : index
    %c0_89 = arith.constant 0 : index
    %120 = vector.load %arg8[%c0_88, %c0_89] : memref<72x256xf32, #tpu.memory_space<vmem>>, vector<72x256xf32>
    %cst_90 = arith.constant dense<0.000000e+00> : vector<8x256xf32>
    %121 = tpu.matmul %119, %120, %cst_90 {dimension_numbers = #tpu.dot_dimension_numbers<[1], [0], [0], [1], [0, 0, 1, 1], [], []>} : vector<8x72xf32>, vector<72x256xf32>, vector<8x256xf32> -> vector<8x256xf32>
    %c0_91 = arith.constant 0 : index
    %c0_92 = arith.constant 0 : index
    %122 = vector.load %arg5[%c0_91, %c0_92] : memref<8x1xf32, #tpu.memory_space<vmem>>, vector<8x1xf32>
    %123 = vector.broadcast %122 : vector<8x1xf32> to vector<8x256xf32>
    %124 = arith.addf %121, %123 : vector<8x256xf32>
    %cst_93 = arith.constant 0.000000e+00 : f32
    %125 = vector.broadcast %cst_93 : f32 to vector<8x256xf32>
    %126 = arith.maximumf %124, %125 : vector<8x256xf32>
    %c0_94 = arith.constant 0 : index
    %c0_95 = arith.constant 0 : index
    %c0_96 = arith.constant 0 : index
    %127 = vector.load %arg6[%c0_94, %c0_95, %c0_96] : memref<1x8x256xf32, #tpu.memory_space<vmem>>, vector<1x8x256xf32>
    %128 = vector.shape_cast %127 : vector<1x8x256xf32> to vector<8x256xf32>
    %129 = vector.shape_cast %126 : vector<8x256xf32> to vector<1x8x256xf32>
    tpu.vector_store %arg6[%c0_94, %c0_95, %c0_96], %129 {strides = array<i32>} : memref<1x8x256xf32, #tpu.memory_space<vmem>>, vector<1x8x256xf32>,
    return
  }
  func.func @transform_0(%arg0: i32) -> (i32, i32, i32) {
    %c0_i32 = arith.constant 0 : i32
    %c0_i32_0 = arith.constant 0 : i32
    %c0_i32_1 = arith.constant 0 : i32
    return %arg0, %c0_i32, %c0_i32_0 : i32, i32, i32
  }
  func.func @transform_1(%arg0: i32) -> (i32, i32) {
    %c0_i32 = arith.constant 0 : i32
    %c0_i32_0 = arith.constant 0 : i32
    %c0_i32_1 = arith.constant 0 : i32
    return %c0_i32, %c0_i32_0 : i32, i32
  }
  func.func @transform_2(%arg0: i32) -> (i32, i32) {
    %c0_i32 = arith.constant 0 : i32
    %c0_i32_0 = arith.constant 0 : i32
    %c0_i32_1 = arith.constant 0 : i32
    return %c0_i32, %c0_i32_0 : i32, i32
  }
  func.func @transform_3(%arg0: i32) -> (i32, i32) {
    %c0_i32 = arith.constant 0 : i32
    %c0_i32_0 = arith.constant 0 : i32
    %c0_i32_1 = arith.constant 0 : i32
    return %c0_i32, %c0_i32_0 : i32, i32
  }
  func.func @transform_4(%arg0: i32) -> (i32, i32) {
    %c0_i32 = arith.constant 0 : i32
    %c0_i32_0 = arith.constant 0 : i32
    %c0_i32_1 = arith.constant 0 : i32
    return %c0_i32, %c0_i32_0 : i32, i32
  }
  func.func @transform_5(%arg0: i32) -> (i32, i32, i32) {
    %c0_i32 = arith.constant 0 : i32
    %c0_i32_0 = arith.constant 0 : i32
    %c0_i32_1 = arith.constant 0 : i32
    return %arg0, %c0_i32, %c0_i32_0 : i32, i32, i32
  }
}

</mosaic_0001>

<llo_original>
// kernel: tpu_custom_call.1
$region0: #{tpu_custom_call.1}
  #allocation0 [shape = 'u32[]', space=smem, size = 0x4, offset = 0x4, fixed_abs, tag = 'smem constant byte address 0x4 - core index']
  #allocation1 [shape = 'u32[72,128]{1,0:T(1,128)}', space=vmem, size = 0x9000, scoped, tag = 'internal scratch']
  #allocation2 [shape = 'f32[8,290]{1,0:T(8,128)}', space=vmem, size = 0x3000, scoped, tag = 'scratch operand']
  #allocation3 [shape = 'f32[72,256]{1,0:T(8,128)}', space=vmem, size = 0x12000, scoped, tag = 'scratch operand']
  %s0 = inlined_call_operand.vmem [shape: f32[2,4,256], index: 0, kind: input, shape index: {}]
  %s1 = inlined_call_operand.hbm [shape: f32[8,36], index: 1, kind: input, shape index: {}]
  %s2 = inlined_call_operand.vmem [shape: f32[8,1], index: 2, kind: input, shape index: {}]
  %s3 = inlined_call_operand.hbm [shape: f32[8,72], index: 3, kind: input, shape index: {}]
  %s4 = inlined_call_operand.vmem [shape: f32[8,1], index: 4, kind: input, shape index: {}]
  %s5 = inlined_call_operand.hbm [shape: f32[2,8,256], index: 5, kind: output, shape index: {}]
  %s6 = sld [smem:[#allocation0]]
  $region61: #{tpu_custom_call.1} parent=0
    _
  %s8 = ssub.s32 1, %s6
  %s9 = scalar_select 0, %s8, %s6
  $region1: #{tpu_custom_call.1} parent=0
    #allocation4 [shape = 'u8[4096]{0}', space=vmem, size = 0x1000, scoped, tag = 'input window, operand 1, single buffered']
    #allocation5 [shape = 's32[2]{0}', space=sflag, size = 0x8, scoped, tag = 'scoped memory for tpu_custom_call.1']
    #allocation6 [shape = 's32[2]{0}', space=sflag, size = 0x8, scoped, tag = 'scoped memory for tpu_custom_call.1']
    #allocation7 [shape = 'u8[4096]{0}', space=vmem, size = 0x1000, scoped, tag = 'input window, operand 3, single buffered']
    #allocation8 [shape = 's32[1]{0}', space=sflag, size = 0x4, scoped, tag = 'scoped memory for tpu_custom_call.1']
    #allocation9 [shape = 'u8[16384]{0}', space=vmem, size = 0x4000, scoped, tag = 'output window, operand 0']
    %10 = vsyncpa [#allocation5], 0
    %11 = vsyncpa [#allocation8], 0
    %12 = vsyncpa [#allocation6], 0
    %s13 = scalar_lea.sflag [#allocation6], 1
    %14 = vsyncpa %s13, 0
    loop: start=0, step=1, limit=4
    $region2: #{tpu_custom_call.1} parent=1 // loop_pre_header
      _
    $region3: #{tpu_custom_call.1} parent=1 // loop_header
      %s16 = sphi 0, %s20
      %p17 = scmp.ge.s32.totalorder %s16, 4
      %s26 = sphi 0, %s28
      %s29 = sphi 0, %s26
      %s30 = sphi 0, %s29
      %s46 = sphi 0, %s30
      %s50 = sphi 0, %s50
      %s52 = sphi 0, %s50
      %s53 = sphi 0, %s52
      %s67 = sphi 0, %s53
      %s71 = sphi 0, %s71
      %s73 = sphi 0, %s71
      %s74 = sphi 0, %s73
      %s88 = sphi 0, %s74
      %s92 = sphi 0, %s92
      %s94 = sphi 0, %s92
      %s95 = sphi 0, %s94
      %s109 = sphi 0, %s95
      %s113 = sphi 0, %s113
      %s115 = sphi 0, %s113
      %s116 = sphi 0, %s115
      %s130 = sphi 0, %s116
      %s136 = sphi 0, %s138
      %s139 = sphi 0, %s136
      %s140 = sphi 0, %s139
      %s156 = sphi 0, %s140
    $region4: #{tpu_custom_call.1} parent=1 // loop_header_branch
      %19 = sbr.rel (%p17) target = $region8
    $region5: #{tpu_custom_call.1} parent=1 // loop_body
      %s21 = ssub.s32 %s16, 1
      %s22 = ssub.s32 %s16, 2
      %s23 = sadd.s32 %s16, 1
      %s24 = ssub.s32 %s16, %s23
      %p25 = scmp.eq.s32.totalorder %s24, 0
      %s27 = sadd.s32 %s26, 1
      %s28 = scalar_select %p25, %s26, %s27
      %p31 = pneg %p25
      %p32 = scmp.eq.s32.totalorder %s16, 1
      %p33 = por %p31, %p32
      %p34 = scmp.ne.s32.totalorder %s26, %s29
      %p35 = scmp.eq.s32.totalorder %s16, 0
      %p36 = por %p34, %p35
      %p37 = scmp.ne.s32.totalorder %s26, %s29
      %p38 = scmp.eq.s32.totalorder %s21, 1
      %p39 = por %p37, %p38
      %p40 = scmp.ne.s32.totalorder %s29, %s30
      %p41 = scmp.eq.s32.totalorder %s21, 0
      %p42 = por %p40, %p41
      %p43 = scmp.ne.s32.totalorder %s29, %s30
      %p44 = scmp.eq.s32.totalorder %s22, 1
      %p45 = por %p43, %p44
      %p47 = scmp.ne.s32.totalorder %s30, %s46
      %p48 = scmp.eq.s32.totalorder %s22, 0
      %p49 = por %p47, %p48
      %s51 = sadd.s32 %s50, 1
      %p54 = scmp.eq.s32.totalorder %s16, 1
      %p55 = scmp.ne.s32.totalorder %s50, %s52
      %p56 = scmp.eq.s32.totalorder %s16, 0
      %p57 = por %p55, %p56
      %p58 = scmp.ne.s32.totalorder %s50, %s52
      %p59 = scmp.eq.s32.totalorder %s21, 1
      %p60 = por %p58, %p59
      %p61 = scmp.ne.s32.totalorder %s52, %s53
      %p62 = scmp.eq.s32.totalorder %s21, 0
      %p63 = por %p61, %p62
      %p64 = scmp.ne.s32.totalorder %s52, %s53
      %p65 = scmp.eq.s32.totalorder %s22, 1
      %p66 = por %p64, %p65
      %p68 = scmp.ne.s32.totalorder %s53, %s67
      %p69 = scmp.eq.s32.totalorder %s22, 0
      %p70 = por %p68, %p69
      %s72 = sadd.s32 %s71, 1
      %p75 = scmp.eq.s32.totalorder %s16, 1
      %p76 = scmp.ne.s32.totalorder %s71, %s73
      %p77 = scmp.eq.s32.totalorder %s16, 0
      %p78 = por %p76, %p77
      %p79 = scmp.ne.s32.totalorder %s71, %s73
      %p80 = scmp.eq.s32.totalorder %s21, 1
      %p81 = por %p79, %p80
      %p82 = scmp.ne.s32.totalorder %s73, %s74
      %p83 = scmp.eq.s32.totalorder %s21, 0
      %p84 = por %p82, %p83
      %p85 = scmp.ne.s32.totalorder %s73, %s74
      %p86 = scmp.eq.s32.totalorder %s22, 1
      %p87 = por %p85, %p86
      %p89 = scmp.ne.s32.totalorder %s74, %s88
      %p90 = scmp.eq.s32.totalorder %s22, 0
      %p91 = por %p89, %p90
      %s93 = sadd.s32 %s92, 1
      %p96 = scmp.eq.s32.totalorder %s16, 1
      %p97 = scmp.ne.s32.totalorder %s92, %s94
      %p98 = scmp.eq.s32.totalorder %s16, 0
      %p99 = por %p97, %p98
      %p100 = scmp.ne.s32.totalorder %s92, %s94
      %p101 = scmp.eq.s32.totalorder %s21, 1
      %p102 = por %p100, %p101
      %p103 = scmp.ne.s32.totalorder %s94, %s95
      %p104 = scmp.eq.s32.totalorder %s21, 0
      %p105 = por %p103, %p104
      %p106 = scmp.ne.s32.totalorder %s94, %s95
      %p107 = scmp.eq.s32.totalorder %s22, 1
      %p108 = por %p106, %p107
      %p110 = scmp.ne.s32.totalorder %s95, %s109
      %p111 = scmp.eq.s32.totalorder %s22, 0
      %p112 = por %p110, %p111
      %s114 = sadd.s32 %s113, 1
      %p117 = scmp.eq.s32.totalorder %s16, 1
      %p118 = scmp.ne.s32.totalorder %s113, %s115
      %p119 = scmp.eq.s32.totalorder %s16, 0
      %p120 = por %p118, %p119
      %p121 = scmp.ne.s32.totalorder %s113, %s115
      %p122 = scmp.eq.s32.totalorder %s21, 1
      %p123 = por %p121, %p122
      %p124 = scmp.ne.s32.totalorder %s115, %s116
      %p125 = scmp.eq.s32.totalorder %s21, 0
      %p126 = por %p124, %p125
      %p127 = scmp.ne.s32.totalorder %s115, %s116
      %p128 = scmp.eq.s32.totalorder %s22, 1
      %p129 = por %p127, %p128
      %p131 = scmp.ne.s32.totalorder %s116, %s130
      %p132 = scmp.eq.s32.totalorder %s22, 0
      %p133 = por %p131, %p132
      %s134 = ssub.s32 %s16, %s23
      %p135 = scmp.eq.s32.totalorder %s134, 0
      %s137 = sadd.s32 %s136, 1
      %s138 = scalar_select %p135, %s136, %s137
      %p141 = pneg %p135
      %p142 = scmp.eq.s32.totalorder %s16, 1
      %p143 = por %p141, %p142
      %p144 = scmp.ne.s32.totalorder %s136, %s139
      %p145 = scmp.eq.s32.totalorder %s16, 0
      %p146 = por %p144, %p145
      %p147 = scmp.ne.s32.totalorder %s136, %s139
      %p148 = scmp.eq.s32.totalorder %s21, 1
      %p149 = por %p147, %p148
      %p150 = scmp.ne.s32.totalorder %s139, %s140
      %p151 = scmp.eq.s32.totalorder %s21, 0
      %p152 = por %p150, %p151
      %p153 = scmp.ne.s32.totalorder %s139, %s140
      %p154 = scmp.eq.s32.totalorder %s22, 1
      %p155 = por %p153, %p154
      %p157 = scmp.ne.s32.totalorder %s140, %s156
      %p158 = scmp.eq.s32.totalorder %s22, 0
      %p159 = por %p157, %p158
      %p160 = scmp.le.s32.totalorder 1, %s16
      %p161 = scmp.lt.s32.totalorder %s16, 3
      %p162 = pnand %p160, %p161
      %p163 = pneg %p162
      // Predicated region
      $region9: #{tpu_custom_call.1} parent=5 // pred_check
        _
      $region10: #{tpu_custom_call.1} parent=5 // pred_check_branch
        %165 = sbr.rel (%p162) target = $region12
      $region11: #{tpu_custom_call.1} parent=5 // pred_region
        %s166 = ssub.s32 %s16, 1
        // Predicated region
        $region13: #{tpu_custom_call.1} parent=11 // pred_check
          %p167 = pneg %p63
        $region14: #{tpu_custom_call.1} parent=11 // pred_check_branch
          %169 = sbr.rel (%p167) target = $region16
        $region15: #{tpu_custom_call.1} parent=11 // pred_region
          %171 = vsyncadd [#allocation5], 0
          %s173 = sshll.u32 %s1, 4
          %s174 = int_to_ptr.hbm [resolvable:$true] %s173
          %s175 = sshll.u32 [#allocation4], 4
          %s176 = int_to_ptr.vmem [resolvable:$true] %s175
          %178 = dma.hbm_to_vmem [thread:$0]  %s174, 128, %s176, [#allocation5]
        $region16: #{tpu_custom_call.1} parent=11 // pred_fallthru
          _
        // Predicated region
        $region17: #{tpu_custom_call.1} parent=11 // pred_check
          %p179 = pneg %p84
        $region18: #{tpu_custom_call.1} parent=11 // pred_check_branch
          %181 = sbr.rel (%p179) target = $region20
        $region19: #{tpu_custom_call.1} parent=11 // pred_region
          _
        $region20: #{tpu_custom_call.1} parent=11 // pred_fallthru
          _
        // Predicated region
        $region21: #{tpu_custom_call.1} parent=11 // pred_check
          %p182 = pneg %p105
        $region22: #{tpu_custom_call.1} parent=11 // pred_check_branch
          %184 = sbr.rel (%p182) target = $region24
        $region23: #{tpu_custom_call.1} parent=11 // pred_region
          %186 = vsyncadd [#allocation8], 0
          %s188 = sshll.u32 %s3, 4
          %s189 = int_to_ptr.hbm [resolvable:$true] %s188
          %s190 = sshll.u32 [#allocation7], 4
          %s191 = int_to_ptr.vmem [resolvable:$true] %s190
          %193 = dma.hbm_to_vmem [thread:$0]  %s189, 128, %s191, [#allocation8]
        $region24: #{tpu_custom_call.1} parent=11 // pred_fallthru
          _
        // Predicated region
        $region25: #{tpu_custom_call.1} parent=11 // pred_check
          %p194 = pneg %p126
        $region26: #{tpu_custom_call.1} parent=11 // pred_check_branch
          %196 = sbr.rel (%p194) target = $region28
        $region27: #{tpu_custom_call.1} parent=11 // pred_region
          _
        $region28: #{tpu_custom_call.1} parent=11 // pred_fallthru
          _
      $region12: #{tpu_custom_call.1} parent=5 // pred_fallthru
        _
      %p197 = scmp.lt.s32.totalorder %s16, 2
      // Predicated region
      $region29: #{tpu_custom_call.1} parent=5 // pred_check
        %p198 = pneg %p197
      $region30: #{tpu_custom_call.1} parent=5 // pred_check_branch
        %200 = sbr.rel (%p198) target = $region32
      $region31: #{tpu_custom_call.1} parent=5 // pred_region
        // Predicated region
        $region33: #{tpu_custom_call.1} parent=31 // pred_check
          %p201 = pneg %p36
        $region34: #{tpu_custom_call.1} parent=31 // pred_check_branch
          %203 = sbr.rel (%p201) target = $region36
        $region35: #{tpu_custom_call.1} parent=31 // pred_region
          %p204 = scmp.lt.s32.totalorder %s16, 1
          %s205 = scalar_select %p204, %s16, 1
          %s206 = smul.addr %s205, 2
          %s207 = smul.addr %s206, 4
          %s208 = scalar_lea.vmem %s0, %s207
        $region36: #{tpu_custom_call.1} parent=31 // pred_fallthru
          _
      $region32: #{tpu_custom_call.1} parent=5 // pred_fallthru
        _
      %p209 = scmp.le.s32.totalorder 1, %s16
      %p210 = scmp.lt.s32.totalorder %s16, 3
      %p211 = pnand %p209, %p210
      %p212 = pneg %p211
      // Predicated region
      $region37: #{tpu_custom_call.1} parent=5 // pred_check
        _
      $region38: #{tpu_custom_call.1} parent=5 // pred_check_branch
        %214 = sbr.rel (%p211) target = $region40
      $region39: #{tpu_custom_call.1} parent=5 // pred_region
        %s215 = ssub.s32 %s16, 1
        // Predicated region
        $region41: #{tpu_custom_call.1} parent=39 // pred_check
          %p216 = pneg %p63
        $region42: #{tpu_custom_call.1} parent=39 // pred_check_branch
          %218 = sbr.rel (%p216) target = $region44
        $region43: #{tpu_custom_call.1} parent=39 // pred_region
          %220 = dma.done [#allocation5], 128
        $region44: #{tpu_custom_call.1} parent=39 // pred_fallthru
          _
        // Predicated region
        $region45: #{tpu_custom_call.1} parent=39 // pred_check
          %p221 = pneg %p105
        $region46: #{tpu_custom_call.1} parent=39 // pred_check_branch
          %223 = sbr.rel (%p221) target = $region48
        $region47: #{tpu_custom_call.1} parent=39 // pred_region
          %225 = dma.done [#allocation8], 128
        $region48: #{tpu_custom_call.1} parent=39 // pred_fallthru
          _
        %p226 = scmp.lt.s32.totalorder %s21, 1
        %s227 = scalar_select %p226, %s21, 1
        %s228 = smul.addr %s227, 2
        %s229 = smul.addr %s228, 4
        %s230 = scalar_lea.vmem %s0, %s229
        %p231 = pneg %p42
        %p232 = pneg %p39
        %p233 = pneg %p63
        %p234 = pneg %p60
        %p235 = pneg %p84
        %p236 = pneg %p81
        %p237 = pneg %p105
        %p238 = pneg %p102
        %p239 = pneg %p126
        %p240 = pneg %p123
        %p241 = pneg %p152
        %p242 = pneg %p149
        %s243 = sand.u32 %s139, 1
        %s244 = scalar_lea.sflag [#allocation6], %s243
        %s245 = sand.u32 %s139, 1
        %s246 = smul.addr %s245, 16
        %s247 = scalar_lea.vmem [#allocation9], %s246
        %p248 = scmp.lt.s32.totalorder %s21, 1
        %s249 = scalar_select %p248, %s21, 1
        %s250 = smul.addr %s249, 2
        %s251 = smul.addr %s250, 4
        %s252 = scalar_lea.vmem %s0, %s251
        %253 = vst [vmem:[#allocation2] sm:$0xff] 0.0
        %254 = vst [vmem:[#allocation2 + $0x8] sm:$0xff] 0.0
        %vm255 = vcmask 277504
        %256 = vst.msk [vmem:[#allocation2 + $0x10] sm:$0xff] %vm255, 0.0
        %v257 = vlaneseq
        %v258 = vand.u32 %v257, 127
        %v259 = vadd.s32 %v258, 128
        %vm260 = vcmp.lt.s32.totalorder %v258, 0
        %v261 = vsub.s32 0, %v258
        %v262 = vsel %vm260, %v261, %v258
        %v263 = vshrl.u32 %v262, 4
        %v264 = vand.u32 %v262, 15
        %v265 = vsub.s32 0, %v264
        %v266 = vsel %vm260, %v265, %v264
        %vm267 = vcmp.lt.s32.totalorder %v259, 0
        %v268 = vsub.s32 0, %v259
        %v269 = vsel %vm267, %v268, %v259
        %v270 = vshrl.u32 %v269, 4
        %v271 = vand.u32 %v269, 15
        %v272 = vsub.s32 0, %v271
        %v273 = vsel %vm267, %v272, %v271
        %vm274 = vcmp.ne.s32.totalorder %v266, 0
        %vm275 = vcmp.ne.s32.totalorder %v273, 0
        %vm276 = vcmp.lt.s32.totalorder %v266, 0
        %vm277 = vcmp.lt.s32.totalorder %v273, 0
        %vm278 = vmand %vm276, %vm274
        %vm279 = vmand %vm277, %vm275
        %v280 = vadd.s32 %v266, 16
        %v281 = vadd.s32 %v273, 16
        %v282 = vsel %vm278, %v280, %v266
        %v283 = vsel %vm279, %v281, %v273
        %vm284 = vcmp.ge.s32.totalorder %v282, 1
        %vm285 = vcmp.ge.s32.totalorder %v283, 1
        %vm286 = vcmp.le.s32.totalorder %v282, 14
        %vm287 = vcmp.le.s32.totalorder %v283, 14
        %v288 = vld [vmem:[%s252] sm:$0xff]
        %290 = vst [vmem:[#allocation1] ss:$2 sm:$0xff] %v288
        %v291 = vld.sshfl [vmem:[#allocation1] sm:$0xff pattern:$0x75316420]
        %v292 = vld.sshfl [vmem:[#allocation1 + $0x8] sm:$0xff pattern:$0x75316420]
        %293 = vrot.lane.b32.xlu0 %v291, 17
        %v294 = vpop.permute.xlu0 %293
        %295 = vrot.lane.b32.xlu0 %v292, 17
        %v296 = vpop.permute.xlu0 %295
        %vm297 = vcmask 138240
        %v298 = vsel %vm297, %v294, %v296
        %vm302 = vcmask 1043592
        %303 = vst.msk [vmem:[#allocation2] sm:$0xf] %vm302, %v294
        %304 = vst [vmem:[#allocation2 + $0x8] sm:$0xf] %v298
        %vm305 = vcmask 134144
        %306 = vst.msk [vmem:[#allocation2 + $0x10] sm:$0xf] %vm305, %v296
        %v307 = vld [vmem:[#allocation2] sm:$0xf]
        %v308 = vld [vmem:[#allocation2 + $0x8] sm:$0xf]
        %v309 = vsel %vm284, 1, 0
        %v310 = vsel %vm285, 1, 0
        %vm311 = vcmp.eq.s32.totalorder %v309, 1
        %vm312 = vcmp.eq.s32.totalorder %v310, 1
        %v313 = vsel %vm311, %v307, 0.0
        %v314 = vsel %vm312, %v308, 0.0
        %315 = vst [vmem:[#allocation3] sm:$0xf] %v313
        %316 = vst [vmem:[#allocation3 + $0x8] sm:$0xf] %v314
        %v317 = vld [vmem:[#allocation2] sm:$0xf]
        %v318 = vld [vmem:[#allocation2 + $0x8] sm:$0xf]
        %v319 = vld [vmem:[#allocation2 + $0x10] sm:$0xf]
        %v323 = vrot.slane %v317, 4
        %v324 = vrot.slane %v318, 4
        %v325 = vrot.slane %v319, 4
        %326 = vrot.lane.b32.xlu0 %v323, 127
        %v327 = vpop.permute.xlu0 %326
        %328 = vrot.lane.b32.xlu0 %v324, 127
        %v329 = vpop.permute.xlu0 %328
        %330 = vrot.lane.b32.xlu0 %v325, 127
        %v331 = vpop.permute.xlu0 %330
        %vm332 = vcmask 1039360
        %v333 = vsel %vm332, %v327, %v329
        %v334 = vsel %vm332, %v329, %v331
        %337 = vst [vmem:[#allocation3] sm:$0xf0] %v333
        %338 = vst [vmem:[#allocation3 + $0x8] sm:$0xf0] %v334
        %v339 = vld [vmem:[#allocation2] sm:$0xf]
        %v340 = vld [vmem:[#allocation2 + $0x8] sm:$0xf]
        %v341 = vld [vmem:[#allocation2 + $0x10] sm:$0xf]
        %v342 = vsel %vm286, 1, 0
        %v343 = vsel %vm287, 1, 0
        %vm344 = vcmp.eq.s32.totalorder %v342, 1
        %vm345 = vcmp.eq.s32.totalorder %v343, 1
        %349 = vrot.lane.b32.xlu0 %v339, 126
        %v350 = vpop.permute.xlu0 %349
        %351 = vrot.lane.b32.xlu0 %v340, 126
        %v352 = vpop.permute.xlu0 %351
        %353 = vrot.lane.b32.xlu0 %v341, 126
        %v354 = vpop.permute.xlu0 %353
        %vm355 = vcmask 1031168
        %v356 = vsel %vm355, %v350, %v352
        %v357 = vsel %vm355, %v352, %v354
        %v360 = vsel %vm344, %v356, 0.0
        %v361 = vsel %vm345, %v357, 0.0
        %362 = vst [vmem:[#allocation3 + $0x10] sm:$0xf] %v360
        %363 = vst [vmem:[#allocation3 + $0x18] sm:$0xf] %v361
        %v364 = vld [vmem:[#allocation2] sm:$0xf]
        %v365 = vld [vmem:[#allocation2 + $0x8] sm:$0xf]
        %v366 = vld [vmem:[#allocation2 + $0x10] sm:$0xf]
        %370 = vrot.lane.b32.xlu0 %v364, 112
        %v371 = vpop.permute.xlu0 %370
        %372 = vrot.lane.b32.xlu0 %v365, 112
        %v373 = vpop.permute.xlu0 %372
        %374 = vrot.lane.b32.xlu0 %v366, 112
        %v375 = vpop.permute.xlu0 %374
        %vm376 = vcmask 916480
        %v377 = vsel %vm376, %v371, %v373
        %v378 = vsel %vm376, %v373, %v375
        %v381 = vsel %vm311, %v377, 0.0
        %v382 = vsel %vm312, %v378, 0.0
        %v385 = vrot.slane %v381, 4
        %v386 = vrot.slane %v382, 4
        %389 = vst [vmem:[#allocation3 + $0x10] sm:$0xf0] %v385
        %390 = vst [vmem:[#allocation3 + $0x18] sm:$0xf0] %v386
        %v391 = vld [vmem:[#allocation2] sm:$0xf]
        %v392 = vld [vmem:[#allocation2 + $0x8] sm:$0xf]
        %v393 = vld [vmem:[#allocation2 + $0x10] sm:$0xf]
        %397 = vrot.lane.b32.xlu0 %v391, 111
        %v398 = vpop.permute.xlu0 %397
        %399 = vrot.lane.b32.xlu0 %v392, 111
        %v400 = vpop.permute.xlu0 %399
        %401 = vrot.lane.b32.xlu0 %v393, 111
        %v402 = vpop.permute.xlu0 %401
        %vm403 = vcmask 908288
        %v404 = vsel %vm403, %v398, %v400
        %v405 = vsel %vm403, %v400, %v402
        %408 = vst [vmem:[#allocation3 + $0x20] sm:$0xf] %v404
        %409 = vst [vmem:[#allocation3 + $0x28] sm:$0xf] %v405
        %v410 = vld [vmem:[#allocation2] sm:$0xf]
        %v411 = vld [vmem:[#allocation2 + $0x8] sm:$0xf]
        %v412 = vld [vmem:[#allocation2 + $0x10] sm:$0xf]
        %416 = vrot.lane.b32.xlu0 %v410, 110
        %v417 = vpop.permute.xlu0 %416
        %418 = vrot.lane.b32.xlu0 %v411, 110
        %v419 = vpop.permute.xlu0 %418
        %420 = vrot.lane.b32.xlu0 %v412, 110
        %v421 = vpop.permute.xlu0 %420
        %vm422 = vcmask 900096
        %v423 = vsel %vm422, %v417, %v419
        %v424 = vsel %vm422, %v419, %v421
        %v427 = vsel %vm344, %v423, 0.0
        %v428 = vsel %vm345, %v424, 0.0
        %v431 = vrot.slane %v427, 4
        %v432 = vrot.slane %v428, 4
        %435 = vst [vmem:[#allocation3 + $0x20] sm:$0xf0] %v431
        %436 = vst [vmem:[#allocation3 + $0x28] sm:$0xf0] %v432
        %v437 = vld [vmem:[#allocation2] sm:$0xf]
        %v438 = vld [vmem:[#allocation2 + $0x8] sm:$0xf]
        %v439 = vld [vmem:[#allocation2 + $0x10] sm:$0xf]
        %443 = vrot.lane.b32.xlu0 %v437, 96
        %v444 = vpop.permute.xlu0 %443
        %445 = vrot.lane.b32.xlu0 %v438, 96
        %v446 = vpop.permute.xlu0 %445
        %447 = vrot.lane.b32.xlu0 %v439, 96
        %v448 = vpop.permute.xlu0 %447
        %vm449 = vcmask 785408
        %v450 = vsel %vm449, %v444, %v446
        %v451 = vsel %vm449, %v446, %v448
        %v454 = vsel %vm311, %v450, 0.0
        %v455 = vsel %vm312, %v451, 0.0
        %456 = vst [vmem:[#allocation3 + $0x30] sm:$0xf] %v454
        %457 = vst [vmem:[#allocation3 + $0x38] sm:$0xf] %v455
        %v458 = vld [vmem:[#allocation2] sm:$0xf]
        %v459 = vld [vmem:[#allocation2 + $0x8] sm:$0xf]
        %v460 = vld [vmem:[#allocation2 + $0x10] sm:$0xf]
        %v464 = vrot.slane %v458, 4
        %v465 = vrot.slane %v459, 4
        %v466 = vrot.slane %v460, 4
        %467 = vrot.lane.b32.xlu0 %v464, 95
        %v468 = vpop.permute.xlu0 %467
        %469 = vrot.lane.b32.xlu0 %v465, 95
        %v470 = vpop.permute.xlu0 %469
        %471 = vrot.lane.b32.xlu0 %v466, 95
        %v472 = vpop.permute.xlu0 %471
        %vm473 = vcmask 777216
        %v474 = vsel %vm473, %v468, %v470
        %v475 = vsel %vm473, %v470, %v472
        %478 = vst [vmem:[#allocation3 + $0x30] sm:$0xf0] %v474
        %479 = vst [vmem:[#allocation3 + $0x38] sm:$0xf0] %v475
        %v480 = vld [vmem:[#allocation2] sm:$0xf]
        %v481 = vld [vmem:[#allocation2 + $0x8] sm:$0xf]
        %v482 = vld [vmem:[#allocation2 + $0x10] sm:$0xf]
        %486 = vrot.lane.b32.xlu0 %v480, 94
        %v487 = vpop.permute.xlu0 %486
        %488 = vrot.lane.b32.xlu0 %v481, 94
        %v489 = vpop.permute.xlu0 %488
        %490 = vrot.lane.b32.xlu0 %v482, 94
        %v491 = vpop.permute.xlu0 %490
        %vm492 = vcmask 769024
        %v493 = vsel %vm492, %v487, %v489
        %v494 = vsel %vm492, %v489, %v491
        %v497 = vsel %vm344, %v493, 0.0
        %v498 = vsel %vm345, %v494, 0.0
        %499 = vst [vmem:[#allocation3 + $0x40] sm:$0xf] %v497
        %500 = vst [vmem:[#allocation3 + $0x48] sm:$0xf] %v498
        %v501 = vld [vmem:[#allocation4] sm:$0xff]
        %v502 = vld [vmem:[#allocation3] sm:$0xff]
        %v503 = vld [vmem:[#allocation3 + $0x8] sm:$0xff]
        %v504 = vld [vmem:[#allocation3 + $0x10] sm:$0xff]
        %v505 = vld [vmem:[#allocation3 + $0x18] sm:$0xff]
        %v506 = vld [vmem:[#allocation3 + $0x20] sm:$0xff]
        %v507 = vld [vmem:[#allocation3 + $0x28] sm:$0xff]
        %v508 = vld [vmem:[#allocation3 + $0x30] sm:$0xff]
        %v509 = vld [vmem:[#allocation3 + $0x38] sm:$0xff]
        %v510 = vld [vmem:[#allocation3 + $0x40] sm:$0xf]
        %v511 = vld [vmem:[#allocation3 + $0x48] sm:$0xf]
        %v512 = vld [vmem:[%s2] sm:$0xff]
        %514 = vset.pattern.permute.xlu0 0
        %515 = vperm.xlu0 %514, %v512
        %v516 = vpop.permute.xlu0 %515
        %vm518 = vcmask 293888
        %v520 = vsel %vm518, %v501, 0
        %vm522 = vcmask 1043456
        %v524 = vsel %vm522, %v510, 0
        %v527 = vsel %vm522, %v511, 0
        %529 = vmatpush.msra.mxu0 0.0
        %530 = vmatpush.msra.mxu0 0.0
        %531 = vmatpush.msra.mxu0 0.0
        %532 = vmatpush.msra.mxu0 0.0
        %533 = vmatpush.msra.mxu0 0.0
        %534 = vmatpush.msra.mxu0 0.0
        %535 = vmatpush.msra.mxu0 0.0
        %536 = vmatpush.msra.mxu0 0.0
        %537 = vmatpush.msra.mxu0 0.0
        %538 = vmatpush.msra.mxu0 0.0
        %539 = vmatpush.msra.mxu0 0.0
        %540 = vmatpush.msra.mxu0 %v524
        %541 = vmatpush.msra.mxu0 %v508
        %542 = vmatpush.msra.mxu0 %v506
        %543 = vmatpush.msra.mxu0 %v504
        %544 = vmatpush.msra.mxu0 %v502
        %545 = vmatmul.f32.gmra.mxu0 %v520
        %v546 = vpop.f32.mrf.mxu0
        %v547 = vadd.f32 %v516, %v546
        %548 = vdwg.mxu0
        %549 = vmatpush.msra.mxu0 0.0
        %550 = vmatpush.msra.mxu0 0.0
        %551 = vmatpush.msra.mxu0 0.0
        %552 = vmatpush.msra.mxu0 0.0
        %553 = vmatpush.msra.mxu0 0.0
        %554 = vmatpush.msra.mxu0 0.0
        %555 = vmatpush.msra.mxu0 0.0
        %556 = vmatpush.msra.mxu0 0.0
        %557 = vmatpush.msra.mxu0 0.0
        %558 = vmatpush.msra.mxu0 0.0
        %559 = vmatpush.msra.mxu0 0.0
        %560 = vmatpush.msra.mxu0 %v527
        %561 = vmatpush.msra.mxu0 %v509
        %562 = vmatpush.msra.mxu0 %v507
        %563 = vmatpush.msra.mxu0 %v505
        %564 = vmatpush.msra.mxu0 %v503
        %565 = vmatmul.f32.gmra.mxu0 %v520
        %v566 = vpop.f32.mrf.mxu0
        %v567 = vadd.f32 %v516, %v566
        %568 = vdwg.mxu0
        %v569 = vmax.f32 %v547, 0.0
        %v570 = vmax.f32 %v567, 0.0
        %573 = vrot.lane.b32.xlu0 %v569, 17
        %v574 = vpop.permute.xlu0 %573
        %575 = vrot.lane.b32.xlu0 %v570, 17
        %v576 = vpop.permute.xlu0 %575
        %v577 = vsel %vm297, %v574, %v576
        %vm581 = vcmask 1047688
        %582 = vst.msk [vmem:[#allocation2] sm:$0xff] %vm581, %v574
        %583 = vst [vmem:[#allocation2 + $0x8] sm:$0xff] %v577
        %584 = vst.msk [vmem:[#allocation2 + $0x10] sm:$0xff] %vm297, %v576
        %v585 = vld [vmem:[#allocation2] sm:$0xff]
        %v586 = vld [vmem:[#allocation2 + $0x8] sm:$0xff]
        %v587 = vsel %vm311, %v585, 0.0
        %v588 = vsel %vm312, %v586, 0.0
        %589 = vst [vmem:[#allocation3] sm:$0xff] %v587
        %590 = vst [vmem:[#allocation3 + $0x8] sm:$0xff] %v588
        %v591 = vld [vmem:[#allocation2] sm:$0xff]
        %v592 = vld [vmem:[#allocation2 + $0x8] sm:$0xff]
        %v593 = vld [vmem:[#allocation2 + $0x10] sm:$0xff]
        %597 = vrot.lane.b32.xlu0 %v591, 127
        %v598 = vpop.permute.xlu0 %597
        %599 = vrot.lane.b32.xlu0 %v592, 127
        %v600 = vpop.permute.xlu0 %599
        %601 = vrot.lane.b32.xlu0 %v593, 127
        %v602 = vpop.permute.xlu0 %601
        %v603 = vsel %vm332, %v598, %v600
        %v604 = vsel %vm332, %v600, %v602
        %607 = vst [vmem:[#allocation3 + $0x10] sm:$0xff] %v603
        %608 = vst [vmem:[#allocation3 + $0x18] sm:$0xff] %v604
        %v609 = vld [vmem:[#allocation2] sm:$0xff]
        %v610 = vld [vmem:[#allocation2 + $0x8] sm:$0xff]
        %v611 = vld [vmem:[#allocation2 + $0x10] sm:$0xff]
        %615 = vrot.lane.b32.xlu0 %v609, 126
        %v616 = vpop.permute.xlu0 %615
        %617 = vrot.lane.b32.xlu0 %v610, 126
        %v618 = vpop.permute.xlu0 %617
        %619 = vrot.lane.b32.xlu0 %v611, 126
        %v620 = vpop.permute.xlu0 %619
        %v621 = vsel %vm355, %v616, %v618
        %v622 = vsel %vm355, %v618, %v620
        %v625 = vsel %vm344, %v621, 0.0
        %v626 = vsel %vm345, %v622, 0.0
        %627 = vst [vmem:[#allocation3 + $0x20] sm:$0xff] %v625
        %628 = vst [vmem:[#allocation3 + $0x28] sm:$0xff] %v626
        %v629 = vld [vmem:[#allocation2] sm:$0xff]
        %v630 = vld [vmem:[#allocation2 + $0x8] sm:$0xff]
        %v631 = vld [vmem:[#allocation2 + $0x10] sm:$0xff]
        %635 = vrot.lane.b32.xlu0 %v629, 112
        %v636 = vpop.permute.xlu0 %635
        %637 = vrot.lane.b32.xlu0 %v630, 112
        %v638 = vpop.permute.xlu0 %637
        %639 = vrot.lane.b32.xlu0 %v631, 112
        %v640 = vpop.permute.xlu0 %639
        %v641 = vsel %vm376, %v636, %v638
        %v642 = vsel %vm376, %v638, %v640
        %v645 = vsel %vm311, %v641, 0.0
        %v646 = vsel %vm312, %v642, 0.0
        %647 = vst [vmem:[#allocation3 + $0x30] sm:$0xff] %v645
        %648 = vst [vmem:[#allocation3 + $0x38] sm:$0xff] %v646
        %v649 = vld [vmem:[#allocation2] sm:$0xff]
        %v650 = vld [vmem:[#allocation2 + $0x8] sm:$0xff]
        %v651 = vld [vmem:[#allocation2 + $0x10] sm:$0xff]
        %655 = vrot.lane.b32.xlu0 %v649, 111
        %v656 = vpop.permute.xlu0 %655
        %657 = vrot.lane.b32.xlu0 %v650, 111
        %v658 = vpop.permute.xlu0 %657
        %659 = vrot.lane.b32.xlu0 %v651, 111
        %v660 = vpop.permute.xlu0 %659
        %v661 = vsel %vm403, %v656, %v658
        %v662 = vsel %vm403, %v658, %v660
        %665 = vst [vmem:[#allocation3 + $0x40] sm:$0xff] %v661
        %666 = vst [vmem:[#allocation3 + $0x48] sm:$0xff] %v662
        %v667 = vld [vmem:[#allocation2] sm:$0xff]
        %v668 = vld [vmem:[#allocation2 + $0x8] sm:$0xff]
        %v669 = vld [vmem:[#allocation2 + $0x10] sm:$0xff]
        %673 = vrot.lane.b32.xlu0 %v667, 110
        %v674 = vpop.permute.xlu0 %673
        %675 = vrot.lane.b32.xlu0 %v668, 110
        %v676 = vpop.permute.xlu0 %675
        %677 = vrot.lane.b32.xlu0 %v669, 110
        %v678 = vpop.permute.xlu0 %677
        %v679 = vsel %vm422, %v674, %v676
        %v680 = vsel %vm422, %v676, %v678
        %v683 = vsel %vm344, %v679, 0.0
        %v684 = vsel %vm345, %v680, 0.0
        %685 = vst [vmem:[#allocation3 + $0x50] sm:$0xff] %v683
        %686 = vst [vmem:[#allocation3 + $0x58] sm:$0xff] %v684
        %v687 = vld [vmem:[#allocation2] sm:$0xff]
        %v688 = vld [vmem:[#allocation2 + $0x8] sm:$0xff]
        %v689 = vld [vmem:[#allocation2 + $0x10] sm:$0xff]
        %693 = vrot.lane.b32.xlu0 %v687, 96
        %v694 = vpop.permute.xlu0 %693
        %695 = vrot.lane.b32.xlu0 %v688, 96
        %v696 = vpop.permute.xlu0 %695
        %697 = vrot.lane.b32.xlu0 %v689, 96
        %v698 = vpop.permute.xlu0 %697
        %v699 = vsel %vm449, %v694, %v696
        %v700 = vsel %vm449, %v696, %v698
        %v703 = vsel %vm311, %v699, 0.0
        %v704 = vsel %vm312, %v700, 0.0
        %705 = vst [vmem:[#allocation3 + $0x60] sm:$0xff] %v703
        %706 = vst [vmem:[#allocation3 + $0x68] sm:$0xff] %v704
        %v707 = vld [vmem:[#allocation2] sm:$0xff]
        %v708 = vld [vmem:[#allocation2 + $0x8] sm:$0xff]
        %v709 = vld [vmem:[#allocation2 + $0x10] sm:$0xff]
        %713 = vrot.lane.b32.xlu0 %v707, 95
        %v714 = vpop.permute.xlu0 %713
        %715 = vrot.lane.b32.xlu0 %v708, 95
        %v716 = vpop.permute.xlu0 %715
        %717 = vrot.lane.b32.xlu0 %v709, 95
        %v718 = vpop.permute.xlu0 %717
        %v719 = vsel %vm473, %v714, %v716
        %v720 = vsel %vm473, %v716, %v718
        %723 = vst [vmem:[#allocation3 + $0x70] sm:$0xff] %v719
        %724 = vst [vmem:[#allocation3 + $0x78] sm:$0xff] %v720
        %v725 = vld [vmem:[#allocation2] sm:$0xff]
        %v726 = vld [vmem:[#allocation2 + $0x8] sm:$0xff]
        %v727 = vld [vmem:[#allocation2 + $0x10] sm:$0xff]
        %731 = vrot.lane.b32.xlu0 %v725, 94
        %v732 = vpop.permute.xlu0 %731
        %733 = vrot.lane.b32.xlu0 %v726, 94
        %v734 = vpop.permute.xlu0 %733
        %735 = vrot.lane.b32.xlu0 %v727, 94
        %v736 = vpop.permute.xlu0 %735
        %v737 = vsel %vm492, %v732, %v734
        %v738 = vsel %vm492, %v734, %v736
        %v741 = vsel %vm344, %v737, 0.0
        %v742 = vsel %vm345, %v738, 0.0
        %743 = vst [vmem:[#allocation3 + $0x80] sm:$0xff] %v741
        %744 = vst [vmem:[#allocation3 + $0x88] sm:$0xff] %v742
        %v745 = vld [vmem:[#allocation7] sm:$0xff]
        %v746 = vld [vmem:[#allocation3] sm:$0xff]
        %v747 = vld [vmem:[#allocation3 + $0x8] sm:$0xff]
        %v748 = vld [vmem:[#allocation3 + $0x10] sm:$0xff]
        %v749 = vld [vmem:[#allocation3 + $0x18] sm:$0xff]
        %v750 = vld [vmem:[#allocation3 + $0x20] sm:$0xff]
        %v751 = vld [vmem:[#allocation3 + $0x28] sm:$0xff]
        %v752 = vld [vmem:[#allocation3 + $0x30] sm:$0xff]
        %v753 = vld [vmem:[#allocation3 + $0x38] sm:$0xff]
        %v754 = vld [vmem:[#allocation3 + $0x40] sm:$0xff]
        %v755 = vld [vmem:[#allocation3 + $0x48] sm:$0xff]
        %v756 = vld [vmem:[#allocation3 + $0x50] sm:$0xff]
        %v757 = vld [vmem:[#allocation3 + $0x58] sm:$0xff]
        %v758 = vld [vmem:[#allocation3 + $0x60] sm:$0xff]
        %v759 = vld [vmem:[#allocation3 + $0x68] sm:$0xff]
        %v760 = vld [vmem:[#allocation3 + $0x70] sm:$0xff]
        %v761 = vld [vmem:[#allocation3 + $0x78] sm:$0xff]
        %v762 = vld [vmem:[#allocation3 + $0x80] sm:$0xff]
        %v763 = vld [vmem:[#allocation3 + $0x88] sm:$0xff]
        %v764 = vld [vmem:[%s4] sm:$0xff]
        %766 = vset.pattern.permute.xlu0 0
        %767 = vperm.xlu0 %766, %v764
        %v768 = vpop.permute.xlu0 %767
        %vm770 = vcmask 588800
        %v772 = vsel %vm770, %v745, 0
        %774 = vmatpush.msra.mxu0 0.0
        %775 = vmatpush.msra.mxu0 0.0
        %776 = vmatpush.msra.mxu0 0.0
        %777 = vmatpush.msra.mxu0 0.0
        %778 = vmatpush.msra.mxu0 0.0
        %779 = vmatpush.msra.mxu0 0.0
        %780 = vmatpush.msra.mxu0 0.0
        %781 = vmatpush.msra.mxu0 %v762
        %782 = vmatpush.msra.mxu0 %v760
        %783 = vmatpush.msra.mxu0 %v758
        %784 = vmatpush.msra.mxu0 %v756
        %785 = vmatpush.msra.mxu0 %v754
        %786 = vmatpush.msra.mxu0 %v752
        %787 = vmatpush.msra.mxu0 %v750
        %788 = vmatpush.msra.mxu0 %v748
        %789 = vmatpush.msra.mxu0 %v746
        %790 = vmatmul.f32.gmra.mxu0 %v772
        %v791 = vpop.f32.mrf.mxu0
        %v792 = vadd.f32 %v768, %v791
        %793 = vdwg.mxu0
        %794 = vmatpush.msra.mxu0 0.0
        %795 = vmatpush.msra.mxu0 0.0
        %796 = vmatpush.msra.mxu0 0.0
        %797 = vmatpush.msra.mxu0 0.0
        %798 = vmatpush.msra.mxu0 0.0
        %799 = vmatpush.msra.mxu0 0.0
        %800 = vmatpush.msra.mxu0 0.0
        %801 = vmatpush.msra.mxu0 %v763
        %802 = vmatpush.msra.mxu0 %v761
        %803 = vmatpush.msra.mxu0 %v759
        %804 = vmatpush.msra.mxu0 %v757
        %805 = vmatpush.msra.mxu0 %v755
        %806 = vmatpush.msra.mxu0 %v753
        %807 = vmatpush.msra.mxu0 %v751
        %808 = vmatpush.msra.mxu0 %v749
        %809 = vmatpush.msra.mxu0 %v747
        %810 = vmatmul.f32.gmra.mxu0 %v772
        %v811 = vpop.f32.mrf.mxu0
        %v812 = vadd.f32 %v768, %v811
        %813 = vdwg.mxu0
        %v814 = vmax.f32 %v792, 0.0
        %v815 = vmax.f32 %v812, 0.0
        %816 = vst [vmem:[%s247] sm:$0xff] %v814
        %817 = vst [vmem:[%s247 + $0x8] sm:$0xff] %v815
        %s818 = sand.u32 %s139, 1
        %s819 = scalar_lea.sflag [#allocation6], %s818
        %s820 = sand.u32 %s139, 1
        %s821 = smul.addr %s820, 16
        %s822 = scalar_lea.vmem [#allocation9], %s821
        // Predicated region
        $region49: #{tpu_custom_call.1} parent=39 // pred_check
          %p823 = pneg %p149
        $region50: #{tpu_custom_call.1} parent=39 // pred_check_branch
          %825 = sbr.rel (%p823) target = $region52
        $region51: #{tpu_custom_call.1} parent=39 // pred_region
          %827 = vsyncadd %s819, 0
          %s828 = smul.addr %s21, 2
          %s829 = smul.addr %s828, 8
          %s830 = scalar_lea.hbm %s5, %s829
          %s832 = sshll.u32 %s822, 4
          %s833 = int_to_ptr.vmem [resolvable:$true] %s832
          %s834 = sshll.u32 %s830, 4
          %s835 = int_to_ptr.hbm [resolvable:$true] %s834
          %837 = dma.vmem_to_hbm [thread:$0]  %s833, 256, %s835, %s819
        $region52: #{tpu_custom_call.1} parent=39 // pred_fallthru
          _
      $region40: #{tpu_custom_call.1} parent=5 // pred_fallthru
        _
      %p838 = scmp.le.s32.totalorder 2, %s16
      // Predicated region
      $region53: #{tpu_custom_call.1} parent=5 // pred_check
        %p839 = pneg %p838
      $region54: #{tpu_custom_call.1} parent=5 // pred_check_branch
        %841 = sbr.rel (%p839) target = $region56
      $region55: #{tpu_custom_call.1} parent=5 // pred_region
        %s842 = ssub.s32 %s16, 2
        // Predicated region
        $region57: #{tpu_custom_call.1} parent=55 // pred_check
          %p843 = pneg %p155
        $region58: #{tpu_custom_call.1} parent=55 // pred_check_branch
          %845 = sbr.rel (%p843) target = $region60
        $region59: #{tpu_custom_call.1} parent=55 // pred_region
          %s846 = sand.u32 %s140, 1
          %s847 = scalar_lea.sflag [#allocation6], %s846
          %s848 = sand.u32 %s140, 1
          %s849 = smul.addr %s848, 16
          %s850 = scalar_lea.vmem [#allocation9], %s849
          %852 = dma.done %s847, 256
        $region60: #{tpu_custom_call.1} parent=55 // pred_fallthru
          _
      $region56: #{tpu_custom_call.1} parent=5 // pred_fallthru
        _
    $region6: #{tpu_custom_call.1} parent=1 // loop_footer
      %s20 = sadd.s32 1, %s16
    $region7: #{tpu_custom_call.1} parent=1 // loop_footer_branch
      %15 = sbr.rel target = $region3
    $region8: #{tpu_custom_call.1} parent=1 // loop_exit
      _
    %853 = vsyncpa [#allocation5], 1
    %s854 = scalar_lea.sflag [#allocation5], 1
    %855 = vsyncpa %s854, 1
    %856 = vsyncpa [#allocation8], 1
    %857 = vsyncpa [#allocation6], 1
    %s858 = scalar_lea.sflag [#allocation6], 1
    %859 = vsyncpa %s858, 1

</llo_original>
